<compile_context>
chip_gen: v7x
topology: tpu7x:2x2x1
jax: 0.10.0
libtpu: 0.0.40
codegen_flags: <defaults>
</compile_context>

<pallas_src>
import functools

import jax
import jax.numpy as jnp
from jax import lax
from jax.experimental import pallas as pl
from jax.experimental.pallas import tpu as pltpu

_SUBLANE = 8

# One-hot (TILE_N, V) @ (V, D) row selection on the MXU is only cheaper than
# the output DMA for small vocabularies; above this, use the staged gather.
_MAX_ONEHOT_V = 256

# Per-TensorCore budget for a VMEM-resident table (v7x has only 64 MiB VMEM
# per TC and replicates the table per core under "parallel" grid sharding).
_MAX_RESIDENT_BYTES = 12 * 1024 * 1024

# Cap the (TILE_N, D) output tile so its double-buffer stays modest.
_MAX_OUT_TILE_BYTES = 4 * 1024 * 1024

_VMEM_SLACK_BYTES = 8 * 1024 * 1024
_MIN_VMEM_LIMIT = 16 * 1024 * 1024
_MAX_VMEM_LIMIT = 64 * 1024 * 1024  # v7x physical VMEM per TC


def _round_up(x, m):
    return ((x + m - 1) // m) * m


def _default_tile_n():
    """Generation-tuned token-tile size (amortizes ~0.35us/grid-step cost)."""
    try:
        kind = jax.devices()[0].device_kind.lower()
    except Exception:
        return 1024
    if any(v in kind for v in ("v2", "v3", "v4", "v5")):
        return 512
    if "v6" in kind:
        return 1024
    return 2048  # v7x and newer: 3.2 TB/s HBM wants big tiles


def _emb_onehot_kernel(idx_ref, w_ref, out_ref):
    """Small-vocab gather: one-hot @ table on the MXU (exact row selection in f32).

    idx_ref: (TILE_N, 1) int32 ids for this block (VMEM)
    w_ref:   (V, D) whole table, VMEM-resident (unblocked operand)
    out_ref: (TILE_N, D)
    """
    v = w_ref.shape[0]
    idx = idx_ref[...]                                    # (TILE_N, 1)
    cols = lax.broadcasted_iota(jnp.int32, (1, v), 1)     # (1, V): broadcast in compare
    onehot = (cols == idx).astype(w_ref.dtype)            # (TILE_N, V)
    out_ref[...] = jnp.dot(
        onehot, w_ref[...], preferred_element_type=jnp.float32
    ).astype(out_ref.dtype)


def _emb_gather_kernel(idx_ref, w_ref, out_ref, stage_ref, *, tile_n):
    """Moderate-vocab gather from the VMEM-resident table.

    8-way unrolled: gather 8 rows into an (8, D) VMEM scratch, then issue one
    dense, 8-aligned (8, D) store (no per-row masked partial stores).

    idx_ref:   (n_pad,) int32 ids in SMEM (scalar prefetch)
    w_ref:     (V, D) whole table, VMEM-resident (unblocked operand)
    out_ref:   (TILE_N, D)
    stage_ref: (8, D) VMEM scratch
    """
    base = pl.program_id(0) * tile_n

    def group(g, carry):
        off = pl.multiple_of(g * _SUBLANE, _SUBLANE)
        for r in range(_SUBLANE):                         # static unroll of 8
            row = idx_ref[base + off + r]
            stage_ref[pl.ds(r, 1), :] = w_ref[pl.ds(row, 1), :]
        out_ref[pl.ds(off, _SUBLANE), :] = stage_ref[...]
        return carry

    lax.fori_loop(0, tile_n // _SUBLANE, group, 0)


def meta_emb_forward(indices, weight, *, tile_n=None):
    """Pallas equivalent of F.embedding(indices, weight).

    indices: integer array, arbitrary leading shape (e.g. [B, S])
    weight:  [V, D] embedding table
    returns: indices.shape + (D,)
    """
    V, D = weight.shape
    lead_shape = indices.shape
    itemsize = weight.dtype.itemsize

    table_bytes = V * D * itemsize
    if table_bytes > _MAX_RESIDENT_BYTES:
        # TODO(synk): huge-vocab path (table not VMEM-resident) needs a manual
        # multi-buffered per-row DMA gather from HBM (memory_space=pl.ANY +
        # pltpu.make_async_copy with several row DMAs in flight).
        raise NotImplementedError(
            "Embedding table too large to keep VMEM-resident on all TPU gens.")

    flat_idx = indices.reshape(-1).astype(jnp.int32)
    # F.embedding raises on out-of-range ids; we saturate instead so the
    # in-kernel gather can never go out of bounds.
    flat_idx = jnp.clip(flat_idx, 0, V - 1)
    N = flat_idx.shape[0]

    if tile_n is None:
        tile_n = _default_tile_n()
    max_rows = max(
        _SUBLANE,
        (_MAX_OUT_TILE_BYTES // max(1, D * itemsize)) // _SUBLANE * _SUBLANE)
    tile_n = min(int(tile_n), max_rows)
    tile_n = max(_SUBLANE, min(tile_n, _round_up(N, _SUBLANE)))
    tile_n = _round_up(tile_n, _SUBLANE)

    n_pad = _round_up(N, tile_n)
    flat_idx = jnp.pad(flat_idx, (0, n_pad - N))
    num_tiles = n_pad // tile_n  # NOTE: >=2 tiles lets v7x's two TCs split the grid

    out_bytes = n_pad * D * itemsize
    idx_bytes = n_pad * 4

    # Explicit VMEM budget: single resident table + double-buffered out tiles
    # + path-specific intermediates + slack (deterministic across generations).
    vmem_limit = table_bytes + 2 * tile_n * D * itemsize + _VMEM_SLACK_BYTES

    if V <= _MAX_ONEHOT_V:
        # Small vocab: one-hot matmul gather on the (otherwise idle) MXU.
        vmem_limit += 2 * tile_n * 4 + 2 * tile_n * V * 4  # idx blocks + one-hot temps
        vmem_limit = max(_MIN_VMEM_LIMIT, min(int(vmem_limit), _MAX_VMEM_LIMIT))
        cost = pl.CostEstimate(
            flops=2 * n_pad * V * D,
            transcendentals=0,
            bytes_accessed=int(table_bytes + idx_bytes + out_bytes))
        idx2d = flat_idx.reshape(n_pad, 1)
        out_flat = pl.pallas_call(
            _emb_onehot_kernel,
            out_shape=jax.ShapeDtypeStruct((n_pad, D), weight.dtype),
            grid_spec=pltpu.PrefetchScalarGridSpec(
                num_scalar_prefetch=0,
                grid=(num_tiles,),
                in_specs=[
                    pl.BlockSpec((tile_n, 1), lambda i: (i, 0)),
                    # Whole table resident in VMEM: unblocked operand => copied
                    # in once, never re-DMAed, not double-buffered.
                    pl.BlockSpec(memory_space=pltpu.MemorySpace.VMEM),
                ],
                out_specs=pl.BlockSpec((tile_n, D), lambda i: (i, 0)),
            ),
            compiler_params=pltpu.CompilerParams(
                dimension_semantics=("parallel",),
                vmem_limit_bytes=vmem_limit,
            ),
            cost_estimate=cost,
        )(idx2d, weight)
    else:
        # Moderate vocab (still VMEM-resident): staged 8-row gather.
        # TODO(synk): replace the staged row loop with a single vectorized
        # jnp.take gather once Mosaic's dynamic_gather covers (V, D) tables,
        # and feed ids per tile (not whole-stream scalar prefetch) for very
        # large token counts.
        vmem_limit += _SUBLANE * D * itemsize  # stage scratch
        vmem_limit = max(_MIN_VMEM_LIMIT, min(int(vmem_limit), _MAX_VMEM_LIMIT))
        cost = pl.CostEstimate(
            flops=0,
            transcendentals=0,
            bytes_accessed=int(table_bytes + idx_bytes + out_bytes))
        out_flat = pl.pallas_call(
            functools.partial(_emb_gather_kernel, tile_n=tile_n),
            out_shape=jax.ShapeDtypeStruct((n_pad, D), weight.dtype),
            grid_spec=pltpu.PrefetchScalarGridSpec(
                num_scalar_prefetch=1,  # flat ids live in SMEM
                grid=(num_tiles,),
                in_specs=[
                    pl.BlockSpec(memory_space=pltpu.MemorySpace.VMEM),
                ],
                out_specs=pl.BlockSpec((tile_n, D), lambda i, idx: (i, 0)),
                scratch_shapes=[pltpu.VMEM((_SUBLANE, D), weight.dtype)],
            ),
            compiler_params=pltpu.CompilerParams(
                dimension_semantics=("parallel",),
                vmem_limit_bytes=vmem_limit,
            ),
            cost_estimate=cost,
        )(flat_idx, weight)

    return out_flat[:N].reshape(*lead_shape, D)


def xavier_normal(key, num_embeddings, embedding_dim, dtype=jnp.float32):
    # torch.nn.init.xavier_normal_: std = sqrt(2 / (fan_in + fan_out))
    std = (2.0 / (num_embeddings + embedding_dim)) ** 0.5
    return std * jax.random.normal(key, (num_embeddings, embedding_dim), dtype)


if __name__ == "__main__":
    key = jax.random.PRNGKey(0)
    k_w1, k_idx1, k_w2, k_idx2 = jax.random.split(key, 4)

    # Case 1: small vocab -> one-hot MXU path (shapes consistent with nn.Embedding).
    B, S, V, D = 2, 8, 32, 128
    w1 = xavier_normal(k_w1, V, D)
    idx1 = jax.random.randint(k_idx1, (B, S), minval=0, maxval=V, dtype=jnp.int32)
    out1 = jax.block_until_ready(meta_emb_forward(idx1, w1))
    ref1 = jnp.take(w1, idx1.reshape(-1), axis=0).reshape(B, S, D)
    assert out1.shape == (B, S, D)
    assert jnp.allclose(out1, ref1, atol=1e-6), "one-hot path mismatch vs reference"

    # Case 2: moderate vocab -> VMEM-resident staged row-gather path.
    B2, S2, V2, D2 = 2, 64, 1024, 128
    w2 = xavier_normal(k_w2, V2, D2)
    idx2 = jax.random.randint(k_idx2, (B2, S2), minval=0, maxval=V2, dtype=jnp.int32)
    out2 = jax.block_until_ready(meta_emb_forward(idx2, w2))
    ref2 = jnp.take(w2, idx2.reshape(-1), axis=0).reshape(B2, S2, D2)
    assert out2.shape == (B2, S2, D2)
    assert jnp.allclose(out2, ref2, atol=1e-6), "gather path mismatch vs reference"

    print("KERNEL_OK")
</pallas_src>

<mosaic_0001>
module attributes {stable_mosaic.version = 11 : i64} {
  func.func @_emb_onehot_kernel(%arg0: i32, %arg1: memref<16x1xi32, #tpu.memory_space<vmem>>, %arg2: memref<32x128xf32, #tpu.memory_space<vmem>>, %arg3: memref<16x128xf32, #tpu.memory_space<vmem>>) attributes {dimension_semantics = [#tpu.dimension_semantics<parallel>], iteration_bounds = array<i64: 1>, scalar_prefetch = 0 : i64, scratch_operands = 0 : i64, tpu.core_type = #tpu.core_type<tc>, window_params = [{transform_indices = @transform_0, window_bounds = array<i64: 16, 1>}, {pipeline_mode = #tpu.pipeline_mode<synchronous>, transform_indices = @transform_1, window_bounds = array<i64: 32, 128>}, {transform_indices = @transform_2, window_bounds = array<i64: 16, 128>}]} {
    %c0 = arith.constant 0 : index
    %c0_0 = arith.constant 0 : index
    %0 = vector.load %arg1[%c0, %c0_0] : memref<16x1xi32, #tpu.memory_space<vmem>>, vector<16x1xi32>
    %1 = tpu.iota {dimensions = array<i32: 1>} : vector<1x32xi32>
    %2 = vector.broadcast %1 : vector<1x32xi32> to vector<16x32xi32>
    %3 = vector.broadcast %0 : vector<16x1xi32> to vector<16x32xi32>
    %4 = arith.cmpi eq, %2, %3 : vector<16x32xi32>
    %5 = arith.extui %4 : vector<16x32xi1> to vector<16x32xi32>
    %6 = arith.sitofp %5 : vector<16x32xi32> to vector<16x32xf32>
    %c0_1 = arith.constant 0 : index
    %c0_2 = arith.constant 0 : index
    %7 = vector.load %arg2[%c0_1, %c0_2] : memref<32x128xf32, #tpu.memory_space<vmem>>, vector<32x128xf32>
    %cst = arith.constant dense<0.000000e+00> : vector<16x128xf32>
    %8 = tpu.matmul %6, %7, %cst {dimension_numbers = #tpu.dot_dimension_numbers<[1], [0], [0], [1], [0, 0, 1, 1], [], []>} : vector<16x32xf32>, vector<32x128xf32>, vector<16x128xf32> -> vector<16x128xf32>
    %c0_3 = arith.constant 0 : index
    %c0_4 = arith.constant 0 : index
    %9 = vector.load %arg3[%c0_3, %c0_4] : memref<16x128xf32, #tpu.memory_space<vmem>>, vector<16x128xf32>
    tpu.vector_store %arg3[%c0_3, %c0_4], %8 {strides = array<i32>} : memref<16x128xf32, #tpu.memory_space<vmem>>, vector<16x128xf32>,
    return
  }
  func.func @transform_0(%arg0: i32) -> (i32, i32) {
    %c0_i32 = arith.constant 0 : i32
    %c0_i32_0 = arith.constant 0 : i32
    return %arg0, %c0_i32 : i32, i32
  }
  func.func @transform_1(%arg0: i32) -> (i32, i32) {
    %c0_i32 = arith.constant 0 : i32
    %c0_i32_0 = arith.constant 0 : i32
    %c0_i32_1 = arith.constant 0 : i32
    return %c0_i32, %c0_i32_0 : i32, i32
  }
  func.func @transform_2(%arg0: i32) -> (i32, i32) {
    %c0_i32 = arith.constant 0 : i32
    %c0_i32_0 = arith.constant 0 : i32
    return %arg0, %c0_i32 : i32, i32
  }
}

</mosaic_0001>

<llo_original>
// kernel: tpu_custom_call.1
$region0: #{tpu_custom_call.1}
  #allocation0 [shape = 'u32[]', space=smem, size = 0x4, offset = 0x4, fixed_abs, tag = 'smem constant byte address 0x4 - core index']
  #allocation1 [shape = 'u32[144,128]{1,0:T(1,128)}', space=vmem, size = 0x12000, scoped, tag = 'internal scratch']
  %s0 = inlined_call_operand.vmem [shape: s32[16,1], index: 0, kind: input, shape index: {}]
  %s1 = inlined_call_operand.hbm [shape: f32[32,128], index: 1, kind: input, shape index: {}]
  %s2 = inlined_call_operand.hbm [shape: f32[16,128], index: 2, kind: output, shape index: {}]
  %s3 = sld [smem:[#allocation0]]
  $region22: #{tpu_custom_call.1} parent=0
    _
  %s5 = ssub.s32 1, %s3
  %s6 = scalar_select 0, %s5, %s3
  $region1: #{tpu_custom_call.1} parent=0
    #allocation2 [shape = 'u8[16384]{0}', space=vmem, size = 0x4000, scoped, tag = 'input window, operand 1, single buffered']
    #allocation3 [shape = 's32[1]{0}', space=sflag, size = 0x4, scoped, tag = 'scoped memory for tpu_custom_call.1']
    #allocation4 [shape = 's32[1]{0}', space=sflag, size = 0x4, scoped, tag = 'scoped memory for tpu_custom_call.1']
    #allocation5 [shape = 'u8[8192]{0}', space=vmem, size = 0x2000, scoped, tag = 'output window, operand 0, single buffered']
    %7 = vsyncpa [#allocation3], 0
    %8 = vsyncpa [#allocation4], 0
    // Predicated region
    $region2: #{tpu_custom_call.1} parent=1 // pred_check
      _
    $region3: #{tpu_custom_call.1} parent=1 // pred_check_branch
      %10 = sbr.rel (0) target = $region5
    $region4: #{tpu_custom_call.1} parent=1 // pred_region
      _
    $region5: #{tpu_custom_call.1} parent=1 // pred_fallthru
      _
    // Predicated region
    $region6: #{tpu_custom_call.1} parent=1 // pred_check
      _
    $region7: #{tpu_custom_call.1} parent=1 // pred_check_branch
      %12 = sbr.rel (0) target = $region9
    $region8: #{tpu_custom_call.1} parent=1 // pred_region
      %s14 = ssub.s32 512, 512
      %15 = vsyncadd [#allocation3], %s14
      %s16 = sshll.u32 [#allocation2], 4
      %s17 = int_to_ptr.vmem [resolvable:$true] %s16
      %22 = dma.hbm_to_vmem [thread:$0]  %s1, 512, %s17, [#allocation3], 128, 128, 8
    $region9: #{tpu_custom_call.1} parent=1 // pred_fallthru
      _
    // Predicated region
    $region10: #{tpu_custom_call.1} parent=1 // pred_check
      _
    $region11: #{tpu_custom_call.1} parent=1 // pred_check_branch
      %24 = sbr.rel (0) target = $region13
    $region12: #{tpu_custom_call.1} parent=1 // pred_region
      %25 = dma.done [#allocation3], 512
    $region13: #{tpu_custom_call.1} parent=1 // pred_fallthru
      _
    %v26 = vld [vmem:[%s0] sm:$0xff]
    %v27 = vld [vmem:[%s0 + $0x8] sm:$0xff]
    %v28 = vlaneseq
    %v29 = vand.u32 %v28, 127
    %30 = vset.pattern.permute.xlu0 0
    %31 = vperm.xlu0 %30, %v26
    %v32 = vpop.permute.xlu0 %31
    %33 = vset.pattern.permute.xlu0 0
    %34 = vperm.xlu0 %33, %v27
    %v35 = vpop.permute.xlu0 %34
    %vm36 = vcmp.eq.s32.totalorder %v29, %v32
    %vm37 = vcmp.eq.s32.totalorder %v29, %v35
    %v38 = vsel %vm36, 1, 0
    %v39 = vsel %vm37, 1, 0
    %v40 = vcvt.s32.f32 %v38
    %v41 = vcvt.s32.f32 %v39
    %v42 = vld [vmem:[#allocation2] sm:$0xff]
    %v43 = vld [vmem:[#allocation2 + $0x8] sm:$0xff]
    %v44 = vld [vmem:[#allocation2 + $0x10] sm:$0xff]
    %v45 = vld [vmem:[#allocation2 + $0x18] sm:$0xff]
    %vm46 = vcmask 261120
    %v48 = vsel %vm46, %v40, 0
    %v51 = vsel %vm46, %v41, 0
    %53 = vmatprep.subr.mxu0 0.0
    %54 = vmatpush1.msra.mxu0 %v42
    %55 = vmatprep.subr.mxu0 0.0
    %56 = vmatpush1.msra.mxu0 %v43
    %57 = vmatprep.subr.mxu0 0.0
    %58 = vmatpush1.msra.mxu0 %v44
    %59 = vmatprep.subr.mxu0 0.0
    %60 = vmatpush1.msra.mxu0 %v45
    %61 = vmatprep.subr.mxu0 0.0
    %62 = vmatpush1.msra.mxu0 0.0
    %63 = vmatprep.subr.mxu0 0.0
    %64 = vmatpush1.msra.mxu0 0.0
    %65 = vmatprep.subr.mxu0 0.0
    %66 = vmatpush1.msra.mxu0 0.0
    %67 = vmatprep.subr.mxu0 0.0
    %68 = vmatpush1.msra.mxu0 0.0
    %69 = vmatprep.subr.mxu0 0.0
    %70 = vmatpush1.msra.mxu0 0.0
    %71 = vmatprep.subr.mxu0 0.0
    %72 = vmatpush1.msra.mxu0 0.0
    %73 = vmatprep.subr.mxu0 0.0
    %74 = vmatpush1.msra.mxu0 0.0
    %75 = vmatprep.subr.mxu0 0.0
    %76 = vmatpush1.msra.mxu0 0.0
    %77 = vmatprep.subr.mxu0 0.0
    %78 = vmatpush1.msra.mxu0 0.0
    %79 = vmatprep.subr.mxu0 0.0
    %80 = vmatpush1.msra.mxu0 0.0
    %81 = vmatprep.subr.mxu0 0.0
    %82 = vmatpush1.msra.mxu0 0.0
    %83 = vmatprep.subr.mxu0 0.0
    %84 = vmatpush1.msra.mxu0 0.0
    %85 = vmatprep.subr.mxu0 0.0
    %86 = vmatpush1.msra.mxu0 0.0
    %87 = vmatprep.subr.mxu0 0.0
    %88 = vmatpush1.msra.mxu0 0.0
    %89 = vmatprep.subr.mxu0 0.0
    %90 = vmatpush1.msra.mxu0 0.0
    %91 = vmatprep.subr.mxu0 0.0
    %92 = vmatpush1.msra.mxu0 0.0
    %93 = vmatprep.subr.mxu0 0.0
    %94 = vmatpush1.msra.mxu0 0.0
    %95 = vmatprep.subr.mxu0 0.0
    %96 = vmatpush1.msra.mxu0 0.0
    %97 = vmatprep.subr.mxu0 0.0
    %98 = vmatpush1.msra.mxu0 0.0
    %99 = vmatprep.subr.mxu0 0.0
    %100 = vmatpush1.msra.mxu0 0.0
    %101 = vmatprep.subr.mxu0 0.0
    %102 = vmatpush1.msra.mxu0 0.0
    %103 = vmatprep.subr.mxu0 0.0
    %104 = vmatpush1.msra.mxu0 0.0
    %105 = vmatprep.subr.mxu0 0.0
    %106 = vmatpush1.msra.mxu0 0.0
    %107 = vmatprep.subr.mxu0 0.0
    %108 = vmatpush1.msra.mxu0 0.0
    %109 = vmatprep.subr.mxu0 0.0
    %110 = vmatpush1.msra.mxu0 0.0
    %111 = vmatprep.subr.mxu0 0.0
    %112 = vmatpush1.msra.mxu0 0.0
    %113 = vmatprep.subr.mxu0 0.0
    %114 = vmatpush1.msra.mxu0 0.0
    %115 = vmatprep.subr.mxu0 0.0
    %116 = vmatpush1.msra.mxu0 0.0
    %117 = vmatprep.mubr.f32.mxu0 0.0
    %118 = vmatmul.mubr.f32.gmra.mrb[0].mxu0 %v48
    %v119 = vpop.f32.mrb[0].mxu0
    %v120 = vadd.f32 0.0, %v119
    %v121 = vpop.f32.mrb[0].mxu0
    %122 = vmatprep.mubr.f32.mxu0 0.0
    %123 = vmatmul.mubr.f32.gmra.mrb[0].mxu0 %v51
    %v124 = vpop.f32.mrb[0].mxu0
    %v125 = vadd.f32 0.0, %v124
    %v126 = vpop.f32.mrb[0].mxu0
    %127 = vdwg.mxu0
    %128 = vst [vmem:[#allocation5] sm:$0xff] %v120
    %129 = vst [vmem:[#allocation5 + $0x8] sm:$0xff] %v125
    // Predicated region
    $region14: #{tpu_custom_call.1} parent=1 // pred_check
      _
    $region15: #{tpu_custom_call.1} parent=1 // pred_check_branch
      %131 = sbr.rel (0) target = $region17
    $region16: #{tpu_custom_call.1} parent=1 // pred_region
      %s133 = ssub.s32 256, 256
      %134 = vsyncadd [#allocation4], %s133
      %s135 = sshll.u32 [#allocation5], 4
      %s136 = int_to_ptr.vmem [resolvable:$true] %s135
      %141 = dma.vmem_to_hbm [thread:$0]  %s136, 256, %s2, [#allocation4], 128, 128, 8
    $region17: #{tpu_custom_call.1} parent=1 // pred_fallthru
      _
    // Predicated region
    $region18: #{tpu_custom_call.1} parent=1 // pred_check
      _
    $region19: #{tpu_custom_call.1} parent=1 // pred_check_branch
      %143 = sbr.rel (0) target = $region21
    $region20: #{tpu_custom_call.1} parent=1 // pred_region
      %144 = dma.done [#allocation4], 256
    $region21: #{tpu_custom_call.1} parent=1 // pred_fallthru
      _
    %145 = vsyncpa [#allocation3], 1
    %146 = vsyncpa [#allocation4], 1

</llo_original>
